<compile_context>
chip_gen: v5e
topology: v5e:2x2
jax: 0.10.0
libtpu: 0.0.40
codegen_flags: <defaults>
</compile_context>

<pallas_src>
import functools

import jax
import jax.numpy as jnp
from jax.experimental import pallas as pl
from jax.experimental.pallas import tpu as pltpu


NEG_SLOPE = 0.2  # DGL GATConv default negative_slope


def _fused_gat3_kernel(adj_ref, f_ref,
                       w1_ref, b1_ref,
                       w2_ref, b2_ref,
                       w3_ref, b3_ref,
                       o_ref, *, h_dim):
    """Three fused single-head GAT layers on one VMEM-resident block.

    adj_ref : [N, N]    adjacency, adj[i, j] = 1 iff edge j -> i
    f_ref   : [N, D]    input node features
    wX_ref  : [D, H+2]  [W | W a_l^T | W a_r^T] for layer X
    bX_ref  : [1, H]    bias for layer X
    o_ref   : [N, H]    output node features (after layer 3)
    """
    H = h_dim

    # Additive softmax mask, computed once and reused by all three layers.
    neg_bias = (1.0 - adj_ref[...]) * jnp.float32(-1e30)   # [N, N]

    h = f_ref[...]  # current layer input, stays on-chip across layers
    for w_ref, b_ref in ((w1_ref, b1_ref), (w2_ref, b2_ref), (w3_ref, b3_ref)):
        # Projection + attention-vector dot products in one MXU pass.
        z_ext = jnp.dot(h, w_ref[...], preferred_element_type=jnp.float32)  # [N, H+2]
        z = z_ext[:, :H]                # [N, H]  projected features
        el = z_ext[:, H:H + 1]          # [N, 1]  a_l . z  (source term)
        er = z_ext[:, H + 1:H + 2]      # [N, 1]  a_r . z  (dest term)

        # e[i, j] = el[j] + er[i]  -> logits for edge j -> i.
        e = er + jnp.transpose(el)                       # [N_dst, N_src]
        e = jnp.where(e > 0, e, NEG_SLOPE * e)           # LeakyReLU(0.2)
        e = e + neg_bias                                 # mask non-edges

        # Softmax over incoming edges (row-wise over j).  Masked entries
        # underflow to exactly 0 after the max subtraction because every node
        # has at least one real incoming edge (self-loop requirement).
        m = jnp.max(e, axis=-1, keepdims=True)
        p = jnp.exp(e - m)
        denom = jnp.sum(p, axis=-1, keepdims=True)
        alpha = p * pl.reciprocal(denom, approx=True)    # EUP reciprocal

        # Weighted aggregation of neighbor features on the MXU.
        h = jnp.dot(alpha, z, preferred_element_type=jnp.float32) + b_ref[...]
        h = jnp.maximum(h, 0.0)                          # F.relu activation

    o_ref[...] = h.astype(o_ref.dtype)


def contextual_layers_forward(adj, f, params):
    """Equivalent of contextual_layers.forward(g, f): 3 GAT layers, squeeze."""
    N, D = f.shape
    H = params[0][0].shape[1]
    # gat2/gat3 are declared with in_dim but fed h_dim activations.
    assert D == H, "module only works when in_dim == h_dim"
    assert adj.shape == (N, N)

    # Fold attention vectors into the projection weights (wrapper-side, once).
    w_exts, biases = [], []
    for (w, a_l, a_r, b) in params:
        w_ext = jnp.concatenate([w, w @ a_l.T, w @ a_r.T], axis=1)  # [D, H+2]
        w_exts.append(w_ext)
        biases.append(b)

    kernel = functools.partial(_fused_gat3_kernel, h_dim=H)

    in_specs = [
        pl.BlockSpec((N, N), lambda: (0, 0)),   # adj
        pl.BlockSpec((N, D), lambda: (0, 0)),   # f
    ]
    for w_ext, b in zip(w_exts, biases):
        in_specs.append(pl.BlockSpec(w_ext.shape, lambda: (0, 0)))
        in_specs.append(pl.BlockSpec(b.shape, lambda: (0, 0)))

    out = pl.pallas_call(
        kernel,
        out_shape=jax.ShapeDtypeStruct((N, H), jnp.float32),
        in_specs=in_specs,
        out_specs=pl.BlockSpec((N, H), lambda: (0, 0)),
    )(adj, f,
      w_exts[0], biases[0],
      w_exts[1], biases[1],
      w_exts[2], biases[2])

    # DGL GATConv output would be [N, num_heads=1, H]; .squeeze() -> [N, H].
    return out


def init_params(key, in_dim, h_dim, num_layers=3):
    """Deterministic synthetic parameters for the 3 GATConv layers."""
    params = []
    dims = [in_dim] + [h_dim] * num_layers
    for i in range(num_layers):
        key, k_w, k_al, k_ar = jax.random.split(key, 4)
        d_in, d_out = dims[i], dims[i + 1]
        scale = 1.0 / jnp.sqrt(jnp.float32(d_in))
        w = jax.random.normal(k_w, (d_in, d_out), jnp.float32) * scale
        a_l = jax.random.normal(k_al, (1, d_out), jnp.float32) * 0.1
        a_r = jax.random.normal(k_ar, (1, d_out), jnp.float32) * 0.1
        b = jnp.zeros((1, d_out), jnp.float32)
        params.append((w, a_l, a_r, b))
    return params


if __name__ == "__main__":
    N = 16          # number of graph nodes
    in_dim = 32     # must equal h_dim (see note above)
    h_dim = 32

    key = jax.random.PRNGKey(0)
    key, k_feat, k_adj = jax.random.split(key, 3)

    # Node features.
    f = jax.random.normal(k_feat, (N, in_dim), jnp.float32)

    # Random sparse directed graph + self loops (every node has an in-edge,
    # matching DGL GATConv's no-zero-in-degree requirement).
    adj = (jax.random.uniform(k_adj, (N, N)) < 0.3).astype(jnp.float32)
    adj = jnp.maximum(adj, jnp.eye(N, dtype=jnp.float32))

    params = init_params(key, in_dim, h_dim)

    out = contextual_layers_forward(adj, f, params)
    out = jax.block_until_ready(out)

    assert out.shape == (N, h_dim), out.shape
    assert bool(jnp.all(jnp.isfinite(out)))
    print("KERNEL_OK")
</pallas_src>

<mosaic_0001>
module attributes {stable_mosaic.version = 11 : i64} {
  func.func @_fused_gat3_kernel(%arg0: memref<16x16xf32, #tpu.memory_space<vmem>>, %arg1: memref<16x32xf32, #tpu.memory_space<vmem>>, %arg2: memref<32x34xf32, #tpu.memory_space<vmem>>, %arg3: memref<1x32xf32, #tpu.memory_space<vmem>>, %arg4: memref<32x34xf32, #tpu.memory_space<vmem>>, %arg5: memref<1x32xf32, #tpu.memory_space<vmem>>, %arg6: memref<32x34xf32, #tpu.memory_space<vmem>>, %arg7: memref<1x32xf32, #tpu.memory_space<vmem>>, %arg8: memref<16x32xf32, #tpu.memory_space<vmem>>) attributes {dimension_semantics = [], scalar_prefetch = 0 : i64, scratch_operands = 0 : i64, tpu.core_type = #tpu.core_type<tc>} {
    %c0 = arith.constant 0 : index
    %c0_0 = arith.constant 0 : index
    %0 = vector.load %arg0[%c0, %c0_0] : memref<16x16xf32, #tpu.memory_space<vmem>>, vector<16x16xf32>
    %cst = arith.constant 1.000000e+00 : f32
    %1 = vector.broadcast %cst : f32 to vector<16x16xf32>
    %2 = arith.subf %1, %0 : vector<16x16xf32>
    %cst_1 = arith.constant -1.000000e+30 : f32
    %3 = vector.broadcast %cst_1 : f32 to vector<16x16xf32>
    %4 = arith.mulf %2, %3 : vector<16x16xf32>
    %c0_2 = arith.constant 0 : index
    %c0_3 = arith.constant 0 : index
    %5 = vector.load %arg1[%c0_2, %c0_3] : memref<16x32xf32, #tpu.memory_space<vmem>>, vector<16x32xf32>
    %c0_4 = arith.constant 0 : index
    %c0_5 = arith.constant 0 : index
    %6 = vector.load %arg2[%c0_4, %c0_5] : memref<32x34xf32, #tpu.memory_space<vmem>>, vector<32x34xf32>
    %cst_6 = arith.constant dense<0.000000e+00> : vector<16x34xf32>
    %7 = tpu.matmul %5, %6, %cst_6 {dimension_numbers = #tpu.dot_dimension_numbers<[1], [0], [0], [1], [0, 0, 1, 1], [], []>} : vector<16x32xf32>, vector<32x34xf32>, vector<16x34xf32> -> vector<16x34xf32>
    %8 = vector.extract_strided_slice %7 {offsets = [0, 0], sizes = [16, 32], strides = [1, 1]} : vector<16x34xf32> to vector<16x32xf32>
    %9 = vector.extract_strided_slice %7 {offsets = [0, 32], sizes = [16, 1], strides = [1, 1]} : vector<16x34xf32> to vector<16x1xf32>
    %10 = vector.extract_strided_slice %7 {offsets = [0, 33], sizes = [16, 1], strides = [1, 1]} : vector<16x34xf32> to vector<16x1xf32>
    %11 = tpu.transpose %9, [1, 0] : vector<16x1xf32> -> vector<1x16xf32>
    %12 = vector.broadcast %10 : vector<16x1xf32> to vector<16x16xf32>
    %13 = vector.broadcast %11 : vector<1x16xf32> to vector<16x16xf32>
    %14 = arith.addf %12, %13 : vector<16x16xf32>
    %cst_7 = arith.constant 0.000000e+00 : f32
    %15 = vector.broadcast %cst_7 : f32 to vector<16x16xf32>
    %16 = arith.cmpf ogt, %14, %15 : vector<16x16xf32>
    %cst_8 = arith.constant 2.000000e-01 : f32
    %17 = vector.broadcast %cst_8 : f32 to vector<16x16xf32>
    %18 = arith.mulf %17, %14 : vector<16x16xf32>
    %19 = arith.select %16, %14, %18 : vector<16x16xi1>, vector<16x16xf32>
    %20 = arith.addf %19, %4 : vector<16x16xf32>
    %cst_9 = arith.constant dense<0xFF800000> : vector<16xf32>
    %21 = vector.multi_reduction <maximumf>, %20, %cst_9 [1] : vector<16x16xf32> to vector<16xf32>
    %22 = vector.shape_cast %21 : vector<16xf32> to vector<16x1xf32>
    %23 = vector.broadcast %22 : vector<16x1xf32> to vector<16x16xf32>
    %24 = arith.subf %20, %23 : vector<16x16xf32>
    %25 = math.exp %24 : vector<16x16xf32>
    %cst_10 = arith.constant dense<0.000000e+00> : vector<16xf32>
    %26 = vector.multi_reduction <add>, %25, %cst_10 [1] : vector<16x16xf32> to vector<16xf32>
    %27 = vector.shape_cast %26 : vector<16xf32> to vector<16x1xf32>
    %28 = tpu.reciprocal %27 {approx = true} : vector<16x1xf32> -> vector<16x1xf32>
    %29 = vector.broadcast %28 : vector<16x1xf32> to vector<16x16xf32>
    %30 = arith.mulf %25, %29 : vector<16x16xf32>
    %cst_11 = arith.constant dense<0.000000e+00> : vector<16x32xf32>
    %31 = tpu.matmul %30, %8, %cst_11 {dimension_numbers = #tpu.dot_dimension_numbers<[1], [0], [0], [1], [0, 0, 1, 1], [], []>} : vector<16x16xf32>, vector<16x32xf32>, vector<16x32xf32> -> vector<16x32xf32>
    %c0_12 = arith.constant 0 : index
    %c0_13 = arith.constant 0 : index
    %32 = vector.load %arg3[%c0_12, %c0_13] : memref<1x32xf32, #tpu.memory_space<vmem>>, vector<1x32xf32>
    %33 = vector.broadcast %32 : vector<1x32xf32> to vector<16x32xf32>
    %34 = arith.addf %31, %33 : vector<16x32xf32>
    %cst_14 = arith.constant 0.000000e+00 : f32
    %35 = vector.broadcast %cst_14 : f32 to vector<16x32xf32>
    %36 = arith.maximumf %34, %35 : vector<16x32xf32>
    %c0_15 = arith.constant 0 : index
    %c0_16 = arith.constant 0 : index
    %37 = vector.load %arg4[%c0_15, %c0_16] : memref<32x34xf32, #tpu.memory_space<vmem>>, vector<32x34xf32>
    %cst_17 = arith.constant dense<0.000000e+00> : vector<16x34xf32>
    %38 = tpu.matmul %36, %37, %cst_17 {dimension_numbers = #tpu.dot_dimension_numbers<[1], [0], [0], [1], [0, 0, 1, 1], [], []>} : vector<16x32xf32>, vector<32x34xf32>, vector<16x34xf32> -> vector<16x34xf32>
    %39 = vector.extract_strided_slice %38 {offsets = [0, 0], sizes = [16, 32], strides = [1, 1]} : vector<16x34xf32> to vector<16x32xf32>
    %40 = vector.extract_strided_slice %38 {offsets = [0, 32], sizes = [16, 1], strides = [1, 1]} : vector<16x34xf32> to vector<16x1xf32>
    %41 = vector.extract_strided_slice %38 {offsets = [0, 33], sizes = [16, 1], strides = [1, 1]} : vector<16x34xf32> to vector<16x1xf32>
    %42 = tpu.transpose %40, [1, 0] : vector<16x1xf32> -> vector<1x16xf32>
    %43 = vector.broadcast %41 : vector<16x1xf32> to vector<16x16xf32>
    %44 = vector.broadcast %42 : vector<1x16xf32> to vector<16x16xf32>
    %45 = arith.addf %43, %44 : vector<16x16xf32>
    %cst_18 = arith.constant 0.000000e+00 : f32
    %46 = vector.broadcast %cst_18 : f32 to vector<16x16xf32>
    %47 = arith.cmpf ogt, %45, %46 : vector<16x16xf32>
    %cst_19 = arith.constant 2.000000e-01 : f32
    %48 = vector.broadcast %cst_19 : f32 to vector<16x16xf32>
    %49 = arith.mulf %48, %45 : vector<16x16xf32>
    %50 = arith.select %47, %45, %49 : vector<16x16xi1>, vector<16x16xf32>
    %51 = arith.addf %50, %4 : vector<16x16xf32>
    %cst_20 = arith.constant dense<0xFF800000> : vector<16xf32>
    %52 = vector.multi_reduction <maximumf>, %51, %cst_20 [1] : vector<16x16xf32> to vector<16xf32>
    %53 = vector.shape_cast %52 : vector<16xf32> to vector<16x1xf32>
    %54 = vector.broadcast %53 : vector<16x1xf32> to vector<16x16xf32>
    %55 = arith.subf %51, %54 : vector<16x16xf32>
    %56 = math.exp %55 : vector<16x16xf32>
    %cst_21 = arith.constant dense<0.000000e+00> : vector<16xf32>
    %57 = vector.multi_reduction <add>, %56, %cst_21 [1] : vector<16x16xf32> to vector<16xf32>
    %58 = vector.shape_cast %57 : vector<16xf32> to vector<16x1xf32>
    %59 = tpu.reciprocal %58 {approx = true} : vector<16x1xf32> -> vector<16x1xf32>
    %60 = vector.broadcast %59 : vector<16x1xf32> to vector<16x16xf32>
    %61 = arith.mulf %56, %60 : vector<16x16xf32>
    %cst_22 = arith.constant dense<0.000000e+00> : vector<16x32xf32>
    %62 = tpu.matmul %61, %39, %cst_22 {dimension_numbers = #tpu.dot_dimension_numbers<[1], [0], [0], [1], [0, 0, 1, 1], [], []>} : vector<16x16xf32>, vector<16x32xf32>, vector<16x32xf32> -> vector<16x32xf32>
    %c0_23 = arith.constant 0 : index
    %c0_24 = arith.constant 0 : index
    %63 = vector.load %arg5[%c0_23, %c0_24] : memref<1x32xf32, #tpu.memory_space<vmem>>, vector<1x32xf32>
    %64 = vector.broadcast %63 : vector<1x32xf32> to vector<16x32xf32>
    %65 = arith.addf %62, %64 : vector<16x32xf32>
    %cst_25 = arith.constant 0.000000e+00 : f32
    %66 = vector.broadcast %cst_25 : f32 to vector<16x32xf32>
    %67 = arith.maximumf %65, %66 : vector<16x32xf32>
    %c0_26 = arith.constant 0 : index
    %c0_27 = arith.constant 0 : index
    %68 = vector.load %arg6[%c0_26, %c0_27] : memref<32x34xf32, #tpu.memory_space<vmem>>, vector<32x34xf32>
    %cst_28 = arith.constant dense<0.000000e+00> : vector<16x34xf32>
    %69 = tpu.matmul %67, %68, %cst_28 {dimension_numbers = #tpu.dot_dimension_numbers<[1], [0], [0], [1], [0, 0, 1, 1], [], []>} : vector<16x32xf32>, vector<32x34xf32>, vector<16x34xf32> -> vector<16x34xf32>
    %70 = vector.extract_strided_slice %69 {offsets = [0, 0], sizes = [16, 32], strides = [1, 1]} : vector<16x34xf32> to vector<16x32xf32>
    %71 = vector.extract_strided_slice %69 {offsets = [0, 32], sizes = [16, 1], strides = [1, 1]} : vector<16x34xf32> to vector<16x1xf32>
    %72 = vector.extract_strided_slice %69 {offsets = [0, 33], sizes = [16, 1], strides = [1, 1]} : vector<16x34xf32> to vector<16x1xf32>
    %73 = tpu.transpose %71, [1, 0] : vector<16x1xf32> -> vector<1x16xf32>
    %74 = vector.broadcast %72 : vector<16x1xf32> to vector<16x16xf32>
    %75 = vector.broadcast %73 : vector<1x16xf32> to vector<16x16xf32>
    %76 = arith.addf %74, %75 : vector<16x16xf32>
    %cst_29 = arith.constant 0.000000e+00 : f32
    %77 = vector.broadcast %cst_29 : f32 to vector<16x16xf32>
    %78 = arith.cmpf ogt, %76, %77 : vector<16x16xf32>
    %cst_30 = arith.constant 2.000000e-01 : f32
    %79 = vector.broadcast %cst_30 : f32 to vector<16x16xf32>
    %80 = arith.mulf %79, %76 : vector<16x16xf32>
    %81 = arith.select %78, %76, %80 : vector<16x16xi1>, vector<16x16xf32>
    %82 = arith.addf %81, %4 : vector<16x16xf32>
    %cst_31 = arith.constant dense<0xFF800000> : vector<16xf32>
    %83 = vector.multi_reduction <maximumf>, %82, %cst_31 [1] : vector<16x16xf32> to vector<16xf32>
    %84 = vector.shape_cast %83 : vector<16xf32> to vector<16x1xf32>
    %85 = vector.broadcast %84 : vector<16x1xf32> to vector<16x16xf32>
    %86 = arith.subf %82, %85 : vector<16x16xf32>
    %87 = math.exp %86 : vector<16x16xf32>
    %cst_32 = arith.constant dense<0.000000e+00> : vector<16xf32>
    %88 = vector.multi_reduction <add>, %87, %cst_32 [1] : vector<16x16xf32> to vector<16xf32>
    %89 = vector.shape_cast %88 : vector<16xf32> to vector<16x1xf32>
    %90 = tpu.reciprocal %89 {approx = true} : vector<16x1xf32> -> vector<16x1xf32>
    %91 = vector.broadcast %90 : vector<16x1xf32> to vector<16x16xf32>
    %92 = arith.mulf %87, %91 : vector<16x16xf32>
    %cst_33 = arith.constant dense<0.000000e+00> : vector<16x32xf32>
    %93 = tpu.matmul %92, %70, %cst_33 {dimension_numbers = #tpu.dot_dimension_numbers<[1], [0], [0], [1], [0, 0, 1, 1], [], []>} : vector<16x16xf32>, vector<16x32xf32>, vector<16x32xf32> -> vector<16x32xf32>
    %c0_34 = arith.constant 0 : index
    %c0_35 = arith.constant 0 : index
    %94 = vector.load %arg7[%c0_34, %c0_35] : memref<1x32xf32, #tpu.memory_space<vmem>>, vector<1x32xf32>
    %95 = vector.broadcast %94 : vector<1x32xf32> to vector<16x32xf32>
    %96 = arith.addf %93, %95 : vector<16x32xf32>
    %cst_36 = arith.constant 0.000000e+00 : f32
    %97 = vector.broadcast %cst_36 : f32 to vector<16x32xf32>
    %98 = arith.maximumf %96, %97 : vector<16x32xf32>
    %c0_37 = arith.constant 0 : index
    %c0_38 = arith.constant 0 : index
    %99 = vector.load %arg8[%c0_37, %c0_38] : memref<16x32xf32, #tpu.memory_space<vmem>>, vector<16x32xf32>
    tpu.vector_store %arg8[%c0_37, %c0_38], %98 {strides = array<i32>} : memref<16x32xf32, #tpu.memory_space<vmem>>, vector<16x32xf32>,
    return
  }
}

</mosaic_0001>

<llo_original>
// kernel: tpu_custom_call.1
$region0: #{tpu_custom_call.1}
  #allocation0 [shape = 'u32[]', space=smem, size = 0x4, offset = 0x4, fixed_abs, tag = 'smem constant byte address 0x4 - core index']
  #allocation1 [shape = 'u32[72,128]{1,0:T(1,128)}', space=vmem, size = 0x9000, scoped, tag = 'internal scratch']
  %s0 = inlined_call_operand.hbm [shape: f32[16,16], index: 0, kind: input, shape index: {}]
  %s1 = inlined_call_operand.hbm [shape: f32[16,32], index: 1, kind: input, shape index: {}]
  %s2 = inlined_call_operand.hbm [shape: f32[32,34], index: 2, kind: input, shape index: {}]
  %s3 = inlined_call_operand.vmem [shape: f32[1,32], index: 3, kind: input, shape index: {}]
  %s4 = inlined_call_operand.hbm [shape: f32[32,34], index: 4, kind: input, shape index: {}]
  %s5 = inlined_call_operand.vmem [shape: f32[1,32], index: 5, kind: input, shape index: {}]
  %s6 = inlined_call_operand.hbm [shape: f32[32,34], index: 6, kind: input, shape index: {}]
  %s7 = inlined_call_operand.vmem [shape: f32[1,32], index: 7, kind: input, shape index: {}]
  %s8 = inlined_call_operand.hbm [shape: f32[16,32], index: 8, kind: output, shape index: {}]
  %s9 = sld [smem:[#allocation0]]
  $region62: #{tpu_custom_call.1} parent=0
    _
  %s11 = ssub.s32 1, %s9
  %s12 = scalar_select 0, %s11, %s9
  $region1: #{tpu_custom_call.1} parent=0
    #allocation2 [shape = 'u8[8192]{0}', space=vmem, size = 0x2000, scoped, tag = 'input window, operand 0, single buffered']
    #allocation3 [shape = 's32[1]{0}', space=sflag, size = 0x4, scoped, tag = 'scoped memory for tpu_custom_call.1']
    #allocation4 [shape = 's32[1]{0}', space=sflag, size = 0x4, scoped, tag = 'scoped memory for tpu_custom_call.1']
    #allocation5 [shape = 'u8[8192]{0}', space=vmem, size = 0x2000, scoped, tag = 'input window, operand 1, single buffered']
    #allocation6 [shape = 's32[1]{0}', space=sflag, size = 0x4, scoped, tag = 'scoped memory for tpu_custom_call.1']
    #allocation7 [shape = 'u8[16384]{0}', space=vmem, size = 0x4000, scoped, tag = 'input window, operand 2, single buffered']
    #allocation8 [shape = 'u8[16384]{0}', space=vmem, size = 0x4000, scoped, tag = 'input window, operand 4, single buffered']
    #allocation9 [shape = 's32[1]{0}', space=sflag, size = 0x4, scoped, tag = 'scoped memory for tpu_custom_call.1']
    #allocation10 [shape = 'u8[16384]{0}', space=vmem, size = 0x4000, scoped, tag = 'input window, operand 6, single buffered']
    #allocation11 [shape = 'u8[8192]{0}', space=vmem, size = 0x2000, scoped, tag = 'output window, operand 0, single buffered']
    %13 = vsyncpa [#allocation3], 0
    %14 = vsyncpa [#allocation6], 0
    %15 = vsyncpa [#allocation9], 0
    %16 = vsyncpa [#allocation4], 0
    // Predicated region
    $region2: #{tpu_custom_call.1} parent=1 // pred_check
      _
    $region3: #{tpu_custom_call.1} parent=1 // pred_check_branch
      %18 = sbr.rel (0) target = $region5
    $region4: #{tpu_custom_call.1} parent=1 // pred_region
      %20 = vsyncadd [#allocation3], 0
      %s21 = sshll.u32 %s0, 4
      %s22 = int_to_ptr.hbm [resolvable:$true] %s21
      %s23 = sshll.u32 [#allocation2], 4
      %s24 = int_to_ptr.vmem [resolvable:$true] %s23
      %29 = dma.hbm_to_vmem [thread:$0]  %s22, 256, %s24, [#allocation3], 128, 128, 8
    $region5: #{tpu_custom_call.1} parent=1 // pred_fallthru
      _
    // Predicated region
    $region6: #{tpu_custom_call.1} parent=1 // pred_check
      _
    $region7: #{tpu_custom_call.1} parent=1 // pred_check_branch
      %31 = sbr.rel (0) target = $region9
    $region8: #{tpu_custom_call.1} parent=1 // pred_region
      %33 = vsyncadd [#allocation6], 0
      %s34 = sshll.u32 %s1, 4
      %s35 = int_to_ptr.hbm [resolvable:$true] %s34
      %s36 = sshll.u32 [#allocation5], 4
      %s37 = int_to_ptr.vmem [resolvable:$true] %s36
      %42 = dma.hbm_to_vmem [thread:$0]  %s35, 256, %s37, [#allocation6], 128, 128, 8
    $region9: #{tpu_custom_call.1} parent=1 // pred_fallthru
      _
    // Predicated region
    $region10: #{tpu_custom_call.1} parent=1 // pred_check
      _
    $region11: #{tpu_custom_call.1} parent=1 // pred_check_branch
      %44 = sbr.rel (0) target = $region13
    $region12: #{tpu_custom_call.1} parent=1 // pred_region
      %46 = vsyncadd [#allocation6], 0
      %s47 = sshll.u32 %s2, 4
      %s48 = int_to_ptr.hbm [resolvable:$true] %s47
      %s49 = sshll.u32 [#allocation7], 4
      %s50 = int_to_ptr.vmem [resolvable:$true] %s49
      %55 = dma.hbm_to_vmem [thread:$0]  %s48, 512, %s50, [#allocation6], 128, 128, 8
    $region13: #{tpu_custom_call.1} parent=1 // pred_fallthru
      _
    // Predicated region
    $region14: #{tpu_custom_call.1} parent=1 // pred_check
      _
    $region15: #{tpu_custom_call.1} parent=1 // pred_check_branch
      %57 = sbr.rel (0) target = $region17
    $region16: #{tpu_custom_call.1} parent=1 // pred_region
      _
    $region17: #{tpu_custom_call.1} parent=1 // pred_fallthru
      _
    // Predicated region
    $region18: #{tpu_custom_call.1} parent=1 // pred_check
      _
    $region19: #{tpu_custom_call.1} parent=1 // pred_check_branch
      %59 = sbr.rel (0) target = $region21
    $region20: #{tpu_custom_call.1} parent=1 // pred_region
      %61 = vsyncadd [#allocation9], 0
      %s62 = sshll.u32 %s4, 4
      %s63 = int_to_ptr.hbm [resolvable:$true] %s62
      %s64 = sshll.u32 [#allocation8], 4
      %s65 = int_to_ptr.vmem [resolvable:$true] %s64
      %70 = dma.hbm_to_vmem [thread:$0]  %s63, 512, %s65, [#allocation9], 128, 128, 8
    $region21: #{tpu_custom_call.1} parent=1 // pred_fallthru
      _
    // Predicated region
    $region22: #{tpu_custom_call.1} parent=1 // pred_check
      _
    $region23: #{tpu_custom_call.1} parent=1 // pred_check_branch
      %72 = sbr.rel (0) target = $region25
    $region24: #{tpu_custom_call.1} parent=1 // pred_region
      _
    $region25: #{tpu_custom_call.1} parent=1 // pred_fallthru
      _
    // Predicated region
    $region26: #{tpu_custom_call.1} parent=1 // pred_check
      _
    $region27: #{tpu_custom_call.1} parent=1 // pred_check_branch
      %74 = sbr.rel (0) target = $region29
    $region28: #{tpu_custom_call.1} parent=1 // pred_region
      %76 = vsyncadd [#allocation9], 0
      %s77 = sshll.u32 %s6, 4
      %s78 = int_to_ptr.hbm [resolvable:$true] %s77
      %s79 = sshll.u32 [#allocation10], 4
      %s80 = int_to_ptr.vmem [resolvable:$true] %s79
      %85 = dma.hbm_to_vmem [thread:$0]  %s78, 512, %s80, [#allocation9], 128, 128, 8
    $region29: #{tpu_custom_call.1} parent=1 // pred_fallthru
      _
    // Predicated region
    $region30: #{tpu_custom_call.1} parent=1 // pred_check
      _
    $region31: #{tpu_custom_call.1} parent=1 // pred_check_branch
      %87 = sbr.rel (0) target = $region33
    $region32: #{tpu_custom_call.1} parent=1 // pred_region
      _
    $region33: #{tpu_custom_call.1} parent=1 // pred_fallthru
      _
    // Predicated region
    $region34: #{tpu_custom_call.1} parent=1 // pred_check
      _
    $region35: #{tpu_custom_call.1} parent=1 // pred_check_branch
      %89 = sbr.rel (0) target = $region37
    $region36: #{tpu_custom_call.1} parent=1 // pred_region
      %91 = dma.done [#allocation3], 256
    $region37: #{tpu_custom_call.1} parent=1 // pred_fallthru
      _
    // Predicated region
    $region38: #{tpu_custom_call.1} parent=1 // pred_check
      _
    $region39: #{tpu_custom_call.1} parent=1 // pred_check_branch
      %93 = sbr.rel (0) target = $region41
    $region40: #{tpu_custom_call.1} parent=1 // pred_region
      %95 = dma.done [#allocation6], 256
    $region41: #{tpu_custom_call.1} parent=1 // pred_fallthru
      _
    // Predicated region
    $region42: #{tpu_custom_call.1} parent=1 // pred_check
      _
    $region43: #{tpu_custom_call.1} parent=1 // pred_check_branch
      %97 = sbr.rel (0) target = $region45
    $region44: #{tpu_custom_call.1} parent=1 // pred_region
      %99 = dma.done [#allocation6], 512
    $region45: #{tpu_custom_call.1} parent=1 // pred_fallthru
      _
    // Predicated region
    $region46: #{tpu_custom_call.1} parent=1 // pred_check
      _
    $region47: #{tpu_custom_call.1} parent=1 // pred_check_branch
      %101 = sbr.rel (0) target = $region49
    $region48: #{tpu_custom_call.1} parent=1 // pred_region
      %103 = dma.done [#allocation9], 512
    $region49: #{tpu_custom_call.1} parent=1 // pred_fallthru
      _
    // Predicated region
    $region50: #{tpu_custom_call.1} parent=1 // pred_check
      _
    $region51: #{tpu_custom_call.1} parent=1 // pred_check_branch
      %105 = sbr.rel (0) target = $region53
    $region52: #{tpu_custom_call.1} parent=1 // pred_region
      %107 = dma.done [#allocation9], 512
    $region53: #{tpu_custom_call.1} parent=1 // pred_fallthru
      _
    %v108 = vld [vmem:[#allocation2] sm:$0xff]
    %v109 = vld [vmem:[#allocation2 + $0x8] sm:$0xff]
    %v110 = vsub.f32 1.0, %v108
    %v111 = vsub.f32 1.0, %v109
    %v112 = vmul.f32 %v110, -1e+30
    %v113 = vmul.f32 %v111, -1e+30
    %v114 = vld [vmem:[#allocation5] sm:$0xff]
    %v115 = vld [vmem:[#allocation5 + $0x8] sm:$0xff]
    %v116 = vld [vmem:[#allocation7] sm:$0xff]
    %v117 = vld [vmem:[#allocation7 + $0x8] sm:$0xff]
    %v118 = vld [vmem:[#allocation7 + $0x10] sm:$0xff]
    %v119 = vld [vmem:[#allocation7 + $0x18] sm:$0xff]
    %vm120 = vcmask 261120
    %v122 = vsel %vm120, %v114, 0
    %v125 = vsel %vm120, %v115, 0
    %127 = vmatpush.msra.mxu0 0.0
    %128 = vmatpush.msra.mxu0 0.0
    %129 = vmatpush.msra.mxu0 0.0
    %130 = vmatpush.msra.mxu0 0.0
    %131 = vmatpush.msra.mxu0 0.0
    %132 = vmatpush.msra.mxu0 0.0
    %133 = vmatpush.msra.mxu0 0.0
    %134 = vmatpush.msra.mxu0 0.0
    %135 = vmatpush.msra.mxu0 0.0
    %136 = vmatpush.msra.mxu0 0.0
    %137 = vmatpush.msra.mxu0 0.0
    %138 = vmatpush.msra.mxu0 0.0
    %139 = vmatpush.msra.mxu0 %v119
    %140 = vmatpush.msra.mxu0 %v118
    %141 = vmatpush.msra.mxu0 %v117
    %142 = vmatpush.msra.mxu0 %v116
    %143 = vmatmul.f32.gmra.mxu0 %v122
    %v144 = vpop.f32.mrf.mxu0
    %v145 = vadd.f32 0.0, %v144
    %146 = vmatmul.f32.gmra.mxu0 %v125
    %v147 = vpop.f32.mrf.mxu0
    %v148 = vadd.f32 0.0, %v147
    %149 = vdwg.mxu0
    %152 = vrot.lane.b32.xlu0 %v145, 96
    %v153 = vpop.permute.xlu0 %152
    %154 = vrot.lane.b32.xlu0 %v148, 96
    %v155 = vpop.permute.xlu0 %154
    %158 = vxpose.xlu0.b32.start [1/16] %v153, 128
    %159 = vxpose.xlu0.b32.cont [2/16] %v155, 128
    %160 = vxpose.xlu0.b32.cont [3/16] 0.0, 128
    %161 = vxpose.xlu0.b32.cont [4/16] 0.0, 128
    %162 = vxpose.xlu0.b32.cont [5/16] 0.0, 128
    %163 = vxpose.xlu0.b32.cont [6/16] 0.0, 128
    %164 = vxpose.xlu0.b32.cont [7/16] 0.0, 128
    %165 = vxpose.xlu0.b32.cont [8/16] 0.0, 128
    %166 = vxpose.xlu0.b32.cont [9/16] 0.0, 128
    %167 = vxpose.xlu0.b32.cont [10/16] 0.0, 128
    %168 = vxpose.xlu0.b32.cont [11/16] 0.0, 128
    %169 = vxpose.xlu0.b32.cont [12/16] 0.0, 128
    %170 = vxpose.xlu0.b32.cont [13/16] 0.0, 128
    %171 = vxpose.xlu0.b32.cont [14/16] 0.0, 128
    %172 = vxpose.xlu0.b32.cont [15/16] 0.0, 128
    %173 = vxpose.xlu0.b32.end [16/16] 0.0, 128
    %v174 = vpop.trf.xlu0
    %v175 = vpop.trf.xlu0
    %v176 = vpop.trf.xlu0
    %v177 = vpop.trf.xlu0
    %v178 = vpop.trf.xlu0
    %v179 = vpop.trf.xlu0
    %v180 = vpop.trf.xlu0
    %v181 = vpop.trf.xlu0
    %v182 = vpop.trf.xlu0
    %v183 = vpop.trf.xlu0
    %v184 = vpop.trf.xlu0
    %v185 = vpop.trf.xlu0
    %v186 = vpop.trf.xlu0
    %v187 = vpop.trf.xlu0
    %v188 = vpop.trf.xlu0
    %v189 = vpop.trf.xlu0
    %190 = vset.pattern.permute.xlu0 33
    %191 = vperm.xlu0 %190, %v145
    %v192 = vpop.permute.xlu0 %191
    %194 = vset.pattern.permute.xlu0 33
    %195 = vperm.xlu0 %194, %v148
    %v196 = vpop.permute.xlu0 %195
    %v198 = vperm.slane %v174, 0
    %v199 = vadd.f32 %v192, %v198
    %v200 = vadd.f32 %v196, %v198
    %vm201 = vcmp.gt.f32.partialorder %v199, 0.0
    %vm202 = vcmp.gt.f32.partialorder %v200, 0.0
    %v203 = vmul.f32 %v199, 0.2
    %v204 = vmul.f32 %v200, 0.2
    %v205 = vsel %vm201, %v199, %v203
    %v206 = vsel %vm202, %v200, %v204
    %v207 = vadd.f32 %v205, %v112
    %v208 = vadd.f32 %v206, %v113
    %vm209 = vcmask 130048
    %v210 = vsel %vm209, %v207, -inf
    %211 = vmax.xlane.f32.xlu0 %v210
    %v212 = vpop.xlane.xlu0 %211
    %v213 = vsel %vm209, %v208, -inf
    %214 = vmax.xlane.f32.xlu0 %v213
    %v215 = vpop.xlane.xlu0 %214
    %v216 = vsub.f32 %v207, %v212
    %v217 = vsub.f32 %v208, %v215
    %v218 = vmul.f32 %v216, 1.442695
    %v219 = vpow.pop %v218
    %v220 = vmul.f32 %v217, 1.442695
    %v221 = vpow.pop %v220
    %v222 = vsel %vm209, %v219, 0.0
    %223 = vadd.xlane.f32.xlu0 %v222
    %v224 = vpop.xlane.xlu0 %223
    %v225 = vsel %vm209, %v221, 0.0
    %226 = vadd.xlane.f32.xlu0 %v225
    %v227 = vpop.xlane.xlu0 %226
    %v228 = vrcp.pop %v224
    %v229 = vrcp.pop %v227
    %v230 = vmul.f32 %v219, %v228
    %v231 = vmul.f32 %v221, %v229
    %v232 = vld [vmem:[%s3] sm:$0x1]
    %v234 = vperm.slane %v232, 0
    %v237 = vsel %vm209, %v230, 0
    %v240 = vsel %vm209, %v231, 0
    %242 = vmatpush.msra.mxu0 0.0
    %243 = vmatpush.msra.mxu0 0.0
    %244 = vmatpush.msra.mxu0 0.0
    %245 = vmatpush.msra.mxu0 0.0
    %246 = vmatpush.msra.mxu0 0.0
    %247 = vmatpush.msra.mxu0 0.0
    %248 = vmatpush.msra.mxu0 0.0
    %249 = vmatpush.msra.mxu0 0.0
    %250 = vmatpush.msra.mxu0 0.0
    %251 = vmatpush.msra.mxu0 0.0
    %252 = vmatpush.msra.mxu0 0.0
    %253 = vmatpush.msra.mxu0 0.0
    %254 = vmatpush.msra.mxu0 0.0
    %255 = vmatpush.msra.mxu0 0.0
    %256 = vmatpush.msra.mxu0 %v148
    %257 = vmatpush.msra.mxu0 %v145
    %258 = vmatmul.f32.gmra.mxu0 %v237
    %v259 = vpop.f32.mrf.mxu0
    %v260 = vadd.f32 %v234, %v259
    %261 = vmatmul.f32.gmra.mxu0 %v240
    %v262 = vpop.f32.mrf.mxu0
    %v263 = vadd.f32 %v234, %v262
    %264 = vdwg.mxu0
    %v265 = vmax.f32 %v260, 0.0
    %v266 = vmax.f32 %v263, 0.0
    %v267 = vld [vmem:[#allocation8] sm:$0xff]
    %v268 = vld [vmem:[#allocation8 + $0x8] sm:$0xff]
    %v269 = vld [vmem:[#allocation8 + $0x10] sm:$0xff]
    %v270 = vld [vmem:[#allocation8 + $0x18] sm:$0xff]
    %v272 = vsel %vm120, %v265, 0
    %v275 = vsel %vm120, %v266, 0
    %277 = vmatpush.msra.mxu0 0.0
    %278 = vmatpush.msra.mxu0 0.0
    %279 = vmatpush.msra.mxu0 0.0
    %280 = vmatpush.msra.mxu0 0.0
    %281 = vmatpush.msra.mxu0 0.0
    %282 = vmatpush.msra.mxu0 0.0
    %283 = vmatpush.msra.mxu0 0.0
    %284 = vmatpush.msra.mxu0 0.0
    %285 = vmatpush.msra.mxu0 0.0
    %286 = vmatpush.msra.mxu0 0.0
    %287 = vmatpush.msra.mxu0 0.0
    %288 = vmatpush.msra.mxu0 0.0
    %289 = vmatpush.msra.mxu0 %v270
    %290 = vmatpush.msra.mxu0 %v269
    %291 = vmatpush.msra.mxu0 %v268
    %292 = vmatpush.msra.mxu0 %v267
    %293 = vmatmul.f32.gmra.mxu0 %v272
    %v294 = vpop.f32.mrf.mxu0
    %v295 = vadd.f32 0.0, %v294
    %296 = vmatmul.f32.gmra.mxu0 %v275
    %v297 = vpop.f32.mrf.mxu0
    %v298 = vadd.f32 0.0, %v297
    %299 = vdwg.mxu0
    %302 = vrot.lane.b32.xlu0 %v295, 96
    %v303 = vpop.permute.xlu0 %302
    %304 = vrot.lane.b32.xlu0 %v298, 96
    %v305 = vpop.permute.xlu0 %304
    %308 = vxpose.xlu0.b32.start [1/16] %v303, 128
    %309 = vxpose.xlu0.b32.cont [2/16] %v305, 128
    %310 = vxpose.xlu0.b32.cont [3/16] 0.0, 128
    %311 = vxpose.xlu0.b32.cont [4/16] 0.0, 128
    %312 = vxpose.xlu0.b32.cont [5/16] 0.0, 128
    %313 = vxpose.xlu0.b32.cont [6/16] 0.0, 128
    %314 = vxpose.xlu0.b32.cont [7/16] 0.0, 128
    %315 = vxpose.xlu0.b32.cont [8/16] 0.0, 128
    %316 = vxpose.xlu0.b32.cont [9/16] 0.0, 128
    %317 = vxpose.xlu0.b32.cont [10/16] 0.0, 128
    %318 = vxpose.xlu0.b32.cont [11/16] 0.0, 128
    %319 = vxpose.xlu0.b32.cont [12/16] 0.0, 128
    %320 = vxpose.xlu0.b32.cont [13/16] 0.0, 128
    %321 = vxpose.xlu0.b32.cont [14/16] 0.0, 128
    %322 = vxpose.xlu0.b32.cont [15/16] 0.0, 128
    %323 = vxpose.xlu0.b32.end [16/16] 0.0, 128
    %v324 = vpop.trf.xlu0
    %v325 = vpop.trf.xlu0
    %v326 = vpop.trf.xlu0
    %v327 = vpop.trf.xlu0
    %v328 = vpop.trf.xlu0
    %v329 = vpop.trf.xlu0
    %v330 = vpop.trf.xlu0
    %v331 = vpop.trf.xlu0
    %v332 = vpop.trf.xlu0
    %v333 = vpop.trf.xlu0
    %v334 = vpop.trf.xlu0
    %v335 = vpop.trf.xlu0
    %v336 = vpop.trf.xlu0
    %v337 = vpop.trf.xlu0
    %v338 = vpop.trf.xlu0
    %v339 = vpop.trf.xlu0
    %340 = vset.pattern.permute.xlu0 33
    %341 = vperm.xlu0 %340, %v295
    %v342 = vpop.permute.xlu0 %341
    %344 = vset.pattern.permute.xlu0 33
    %345 = vperm.xlu0 %344, %v298
    %v346 = vpop.permute.xlu0 %345
    %v348 = vperm.slane %v324, 0
    %v349 = vadd.f32 %v342, %v348
    %v350 = vadd.f32 %v346, %v348
    %vm351 = vcmp.gt.f32.partialorder %v349, 0.0
    %vm352 = vcmp.gt.f32.partialorder %v350, 0.0
    %v353 = vmul.f32 %v349, 0.2
    %v354 = vmul.f32 %v350, 0.2
    %v355 = vsel %vm351, %v349, %v353
    %v356 = vsel %vm352, %v350, %v354
    %v357 = vadd.f32 %v355, %v112
    %v358 = vadd.f32 %v356, %v113
    %v359 = vsel %vm209, %v357, -inf
    %360 = vmax.xlane.f32.xlu0 %v359
    %v361 = vpop.xlane.xlu0 %360
    %v362 = vsel %vm209, %v358, -inf
    %363 = vmax.xlane.f32.xlu0 %v362
    %v364 = vpop.xlane.xlu0 %363
    %v365 = vsub.f32 %v357, %v361
    %v366 = vsub.f32 %v358, %v364
    %v367 = vmul.f32 %v365, 1.442695
    %v368 = vpow.pop %v367
    %v369 = vmul.f32 %v366, 1.442695
    %v370 = vpow.pop %v369
    %v371 = vsel %vm209, %v368, 0.0
    %372 = vadd.xlane.f32.xlu0 %v371
    %v373 = vpop.xlane.xlu0 %372
    %v374 = vsel %vm209, %v370, 0.0
    %375 = vadd.xlane.f32.xlu0 %v374
    %v376 = vpop.xlane.xlu0 %375
    %v377 = vrcp.pop %v373
    %v378 = vrcp.pop %v376
    %v379 = vmul.f32 %v368, %v377
    %v380 = vmul.f32 %v370, %v378
    %v381 = vld [vmem:[%s5] sm:$0x1]
    %v383 = vperm.slane %v381, 0
    %v386 = vsel %vm209, %v379, 0
    %v389 = vsel %vm209, %v380, 0
    %391 = vmatpush.msra.mxu0 0.0
    %392 = vmatpush.msra.mxu0 0.0
    %393 = vmatpush.msra.mxu0 0.0
    %394 = vmatpush.msra.mxu0 0.0
    %395 = vmatpush.msra.mxu0 0.0
    %396 = vmatpush.msra.mxu0 0.0
    %397 = vmatpush.msra.mxu0 0.0
    %398 = vmatpush.msra.mxu0 0.0
    %399 = vmatpush.msra.mxu0 0.0
    %400 = vmatpush.msra.mxu0 0.0
    %401 = vmatpush.msra.mxu0 0.0
    %402 = vmatpush.msra.mxu0 0.0
    %403 = vmatpush.msra.mxu0 0.0
    %404 = vmatpush.msra.mxu0 0.0
    %405 = vmatpush.msra.mxu0 %v298
    %406 = vmatpush.msra.mxu0 %v295
    %407 = vmatmul.f32.gmra.mxu0 %v386
    %v408 = vpop.f32.mrf.mxu0
    %v409 = vadd.f32 %v383, %v408
    %410 = vmatmul.f32.gmra.mxu0 %v389
    %v411 = vpop.f32.mrf.mxu0
    %v412 = vadd.f32 %v383, %v411
    %413 = vdwg.mxu0
    %v414 = vmax.f32 %v409, 0.0
    %v415 = vmax.f32 %v412, 0.0
    %v416 = vld [vmem:[#allocation10] sm:$0xff]
    %v417 = vld [vmem:[#allocation10 + $0x8] sm:$0xff]
    %v418 = vld [vmem:[#allocation10 + $0x10] sm:$0xff]
    %v419 = vld [vmem:[#allocation10 + $0x18] sm:$0xff]
    %v421 = vsel %vm120, %v414, 0
    %v424 = vsel %vm120, %v415, 0
    %426 = vmatpush.msra.mxu0 0.0
    %427 = vmatpush.msra.mxu0 0.0
    %428 = vmatpush.msra.mxu0 0.0
    %429 = vmatpush.msra.mxu0 0.0
    %430 = vmatpush.msra.mxu0 0.0
    %431 = vmatpush.msra.mxu0 0.0
    %432 = vmatpush.msra.mxu0 0.0
    %433 = vmatpush.msra.mxu0 0.0
    %434 = vmatpush.msra.mxu0 0.0
    %435 = vmatpush.msra.mxu0 0.0
    %436 = vmatpush.msra.mxu0 0.0
    %437 = vmatpush.msra.mxu0 0.0
    %438 = vmatpush.msra.mxu0 %v419
    %439 = vmatpush.msra.mxu0 %v418
    %440 = vmatpush.msra.mxu0 %v417
    %441 = vmatpush.msra.mxu0 %v416
    %442 = vmatmul.f32.gmra.mxu0 %v421
    %v443 = vpop.f32.mrf.mxu0
    %v444 = vadd.f32 0.0, %v443
    %445 = vmatmul.f32.gmra.mxu0 %v424
    %v446 = vpop.f32.mrf.mxu0
    %v447 = vadd.f32 0.0, %v446
    %448 = vdwg.mxu0
    %451 = vrot.lane.b32.xlu0 %v444, 96
    %v452 = vpop.permute.xlu0 %451
    %453 = vrot.lane.b32.xlu0 %v447, 96
    %v454 = vpop.permute.xlu0 %453
    %457 = vxpose.xlu0.b32.start [1/16] %v452, 128
    %458 = vxpose.xlu0.b32.cont [2/16] %v454, 128
    %459 = vxpose.xlu0.b32.cont [3/16] 0.0, 128
    %460 = vxpose.xlu0.b32.cont [4/16] 0.0, 128
    %461 = vxpose.xlu0.b32.cont [5/16] 0.0, 128
    %462 = vxpose.xlu0.b32.cont [6/16] 0.0, 128
    %463 = vxpose.xlu0.b32.cont [7/16] 0.0, 128
    %464 = vxpose.xlu0.b32.cont [8/16] 0.0, 128
    %465 = vxpose.xlu0.b32.cont [9/16] 0.0, 128
    %466 = vxpose.xlu0.b32.cont [10/16] 0.0, 128
    %467 = vxpose.xlu0.b32.cont [11/16] 0.0, 128
    %468 = vxpose.xlu0.b32.cont [12/16] 0.0, 128
    %469 = vxpose.xlu0.b32.cont [13/16] 0.0, 128
    %470 = vxpose.xlu0.b32.cont [14/16] 0.0, 128
    %471 = vxpose.xlu0.b32.cont [15/16] 0.0, 128
    %472 = vxpose.xlu0.b32.end [16/16] 0.0, 128
    %v473 = vpop.trf.xlu0
    %v474 = vpop.trf.xlu0
    %v475 = vpop.trf.xlu0
    %v476 = vpop.trf.xlu0
    %v477 = vpop.trf.xlu0
    %v478 = vpop.trf.xlu0
    %v479 = vpop.trf.xlu0
    %v480 = vpop.trf.xlu0
    %v481 = vpop.trf.xlu0
    %v482 = vpop.trf.xlu0
    %v483 = vpop.trf.xlu0
    %v484 = vpop.trf.xlu0
    %v485 = vpop.trf.xlu0
    %v486 = vpop.trf.xlu0
    %v487 = vpop.trf.xlu0
    %v488 = vpop.trf.xlu0
    %489 = vset.pattern.permute.xlu0 33
    %490 = vperm.xlu0 %489, %v444
    %v491 = vpop.permute.xlu0 %490
    %493 = vset.pattern.permute.xlu0 33
    %494 = vperm.xlu0 %493, %v447
    %v495 = vpop.permute.xlu0 %494
    %v497 = vperm.slane %v473, 0
    %v498 = vadd.f32 %v491, %v497
    %v499 = vadd.f32 %v495, %v497
    %vm500 = vcmp.gt.f32.partialorder %v498, 0.0
    %vm501 = vcmp.gt.f32.partialorder %v499, 0.0
    %v502 = vmul.f32 %v498, 0.2
    %v503 = vmul.f32 %v499, 0.2
    %v504 = vsel %vm500, %v498, %v502
    %v505 = vsel %vm501, %v499, %v503
    %v506 = vadd.f32 %v504, %v112
    %v507 = vadd.f32 %v505, %v113
    %v508 = vsel %vm209, %v506, -inf
    %509 = vmax.xlane.f32.xlu0 %v508
    %v510 = vpop.xlane.xlu0 %509
    %v511 = vsel %vm209, %v507, -inf
    %512 = vmax.xlane.f32.xlu0 %v511
    %v513 = vpop.xlane.xlu0 %512
    %v514 = vsub.f32 %v506, %v510
    %v515 = vsub.f32 %v507, %v513
    %v516 = vmul.f32 %v514, 1.442695
    %v517 = vpow.pop %v516
    %v518 = vmul.f32 %v515, 1.442695
    %v519 = vpow.pop %v518
    %v520 = vsel %vm209, %v517, 0.0
    %521 = vadd.xlane.f32.xlu0 %v520
    %v522 = vpop.xlane.xlu0 %521
    %v523 = vsel %vm209, %v519, 0.0
    %524 = vadd.xlane.f32.xlu0 %v523
    %v525 = vpop.xlane.xlu0 %524
    %v526 = vrcp.pop %v522
    %v527 = vrcp.pop %v525
    %v528 = vmul.f32 %v517, %v526
    %v529 = vmul.f32 %v519, %v527
    %v530 = vld [vmem:[%s7] sm:$0x1]
    %v532 = vperm.slane %v530, 0
    %v535 = vsel %vm209, %v528, 0
    %v538 = vsel %vm209, %v529, 0
    %540 = vmatpush.msra.mxu0 0.0
    %541 = vmatpush.msra.mxu0 0.0
    %542 = vmatpush.msra.mxu0 0.0
    %543 = vmatpush.msra.mxu0 0.0
    %544 = vmatpush.msra.mxu0 0.0
    %545 = vmatpush.msra.mxu0 0.0
    %546 = vmatpush.msra.mxu0 0.0
    %547 = vmatpush.msra.mxu0 0.0
    %548 = vmatpush.msra.mxu0 0.0
    %549 = vmatpush.msra.mxu0 0.0
    %550 = vmatpush.msra.mxu0 0.0
    %551 = vmatpush.msra.mxu0 0.0
    %552 = vmatpush.msra.mxu0 0.0
    %553 = vmatpush.msra.mxu0 0.0
    %554 = vmatpush.msra.mxu0 %v447
    %555 = vmatpush.msra.mxu0 %v444
    %556 = vmatmul.f32.gmra.mxu0 %v535
    %v557 = vpop.f32.mrf.mxu0
    %v558 = vadd.f32 %v532, %v557
    %559 = vmatmul.f32.gmra.mxu0 %v538
    %v560 = vpop.f32.mrf.mxu0
    %v561 = vadd.f32 %v532, %v560
    %562 = vdwg.mxu0
    %v563 = vmax.f32 %v558, 0.0
    %v564 = vmax.f32 %v561, 0.0
    %565 = vst.msk [vmem:[#allocation11] sm:$0xff] %vm120, %v563
    %566 = vst.msk [vmem:[#allocation11 + $0x8] sm:$0xff] %vm120, %v564
    // Predicated region
    $region54: #{tpu_custom_call.1} parent=1 // pred_check
      _
    $region55: #{tpu_custom_call.1} parent=1 // pred_check_branch
      %568 = sbr.rel (0) target = $region57
    $region56: #{tpu_custom_call.1} parent=1 // pred_region
      %570 = vsyncadd [#allocation4], 0
      %s571 = sshll.u32 [#allocation11], 4
      %s572 = int_to_ptr.vmem [resolvable:$true] %s571
      %s573 = sshll.u32 %s8, 4
      %s574 = int_to_ptr.hbm [resolvable:$true] %s573
      %579 = dma.vmem_to_hbm [thread:$0]  %s572, 256, %s574, [#allocation4], 128, 128, 8
    $region57: #{tpu_custom_call.1} parent=1 // pred_fallthru
      _
    // Predicated region
    $region58: #{tpu_custom_call.1} parent=1 // pred_check
      _
    $region59: #{tpu_custom_call.1} parent=1 // pred_check_branch
      %581 = sbr.rel (0) target = $region61
    $region60: #{tpu_custom_call.1} parent=1 // pred_region
      %583 = dma.done [#allocation4], 256
    $region61: #{tpu_custom_call.1} parent=1 // pred_fallthru
      _
    %584 = vsyncpa [#allocation3], 1
    %585 = vsyncpa [#allocation6], 1
    %586 = vsyncpa [#allocation9], 1
    %587 = vsyncpa [#allocation4], 1

</llo_original>
